<compile_context>
chip_gen: v7x
topology: tpu7x:2x2x1
jax: 0.10.0
libtpu: 0.0.40
codegen_flags: <defaults>
</compile_context>

<pallas_src>
import functools

import jax
import jax.numpy as jnp
from jax.experimental import pallas as pl
from jax.experimental.pallas import tpu as pltpu


# ---------------------------------------------------------------------------
# Kernel: streaming spatial sum-pool over the (B*C, H*W) slab.
# ---------------------------------------------------------------------------
def _pool_sum_kernel(x_ref, o_ref, acc_ref, *, inv_hw, lanes):
    # x_ref:   (TR, TK) f32 tile of the (rows, hw) slab (lane-dense last dim).
    # o_ref:   (TR, 1)  f32 output block, resident across the k (spatial) axis.
    # acc_ref: (TR, 128) f32 VMEM scratch holding lane-dense partial sums.
    k = pl.program_id(1)

    @pl.when(k == 0)
    def _init():
        acc_ref[...] = jnp.zeros_like(acc_ref)

    # Lane-dense accumulation on the VPU: fold the tile's TK lanes into 128
    # lanes via static, lane-aligned 128-wide slices (no cross-lane work, no
    # masked narrow stores on the hot path).
    x = x_ref[...]                                           # (TR, TK)
    partial = x[:, 0:128]
    for j in range(1, lanes):                                # lanes = TK // 128 (small, static)
        partial = partial + x[:, j * 128:(j + 1) * 128]
    acc_ref[...] += partial

    @pl.when(k == pl.num_programs(1) - 1)
    def _finalize():
        # Single XLU reduce + scale + narrow (TR, 1) store, once per row tile.
        o_ref[...] = jnp.sum(acc_ref[...], axis=1, keepdims=True) * inv_hw


def _round_up(x, m):
    return ((x + m - 1) // m) * m


def _tile_config(rows, hw):
    """Pick (tr, tk, scoped_vmem_limit_bytes) for the streaming pool kernel."""
    try:
        phys = int(pltpu.get_tpu_info().vmem_capacity_bytes)
    except Exception:
        phys = 64 << 20  # conservative fallback: v7x per-TC VMEM

    # Leave headroom below physical VMEM; raise the scoped limit explicitly.
    scoped_limit = min((phys * 3) // 4, 96 << 20)            # 48 MiB on v7x, 96 MiB on v5e/v6e
    # Double-buffered input tile (2x) + (tr,128) scratch + output + slack.
    tile_budget = min(16 << 20, scoped_limit // 3)           # ~16 MiB everywhere

    # Lane dim: multiple of 128, modest cap so the per-step lane-fold unroll
    # stays small; the rest of the byte budget goes into the row (sublane) dim.
    lane_cap = 1024
    tk = min(_round_up(hw, 128), lane_cap)
    tr = max(8, (tile_budget // (tk * 4) // 8) * 8)
    rows_aligned = _round_up(rows, 8)
    tr = min(tr, rows_aligned)

    # v7x megacore: keep >= 2 row tiles when rows allow it so both TensorCores
    # get work on the "parallel" axis (harmless single extra step on 1-TC chips).
    if tr >= rows_aligned and rows_aligned >= 16:
        tr = max(8, ((rows_aligned // 2) // 8) * 8)
    return tr, tk, scoped_limit


def _my_channel_attention(x, w1, b1, w2, b2):
    """x: (B, C, H, W) float32. Returns (C,) float32 (matches PyTorch output)."""
    B, C, H, W = x.shape
    rows, hw = B * C, H * W
    x2d = x.reshape(rows, hw).astype(jnp.float32)            # lane-dense slab (free for NCHW)

    tr, tk, vmem_limit = _tile_config(rows, hw)
    rows_p = _round_up(rows, tr)
    hw_p = _round_up(hw, tk)
    if rows_p != rows or hw_p != hw:
        # Zero padding keeps the spatial sum exact; padded rows are sliced off.
        x2d = jnp.pad(x2d, ((0, rows_p - rows), (0, hw_p - hw)))

    grid = (rows_p // tr, hw_p // tk)

    pooled = pl.pallas_call(
        functools.partial(_pool_sum_kernel, inv_hw=1.0 / hw, lanes=tk // 128),
        out_shape=jax.ShapeDtypeStruct((rows_p, 1), jnp.float32),
        grid=grid,
        in_specs=[pl.BlockSpec((tr, tk), lambda r, k: (r, k))],
        out_specs=pl.BlockSpec((tr, 1), lambda r, k: (r, 0)),
        scratch_shapes=[pltpu.VMEM((tr, 128), jnp.float32)],
        compiler_params=pltpu.CompilerParams(
            dimension_semantics=("parallel", "arbitrary"),
            vmem_limit_bytes=vmem_limit,
        ),
        cost_estimate=pl.CostEstimate(
            flops=rows_p * hw_p,
            transcendentals=0,
            bytes_accessed=rows_p * hw_p * 4 + rows_p * 4,
        ),
    )(x2d)

    pooled = pooled[:rows, 0].reshape(B, C)

    # Tiny MLP epilogue (Linear -> Tanh -> ReLU -> Linear, batch mean): plain
    # XLA ops — a second pallas_call launch + HBM round-trip costs more than
    # the ~B*C*4 + 4*C FLOPs of math (perf review).
    h = jnp.maximum(jnp.tanh(pooled @ w1 + b1), 0.0)          # (B, 4)
    out = (h @ w2 + b2).mean(axis=0)                          # (C,)
    return out


my_channel_attention = jax.jit(_my_channel_attention)


def reference_channel_attention(x, w1, b1, w2, b2):
    """Pure-JAX reference mirroring the PyTorch forward."""
    pooled = x.mean(axis=-1).mean(axis=-1)                    # (B, C)
    h = jnp.maximum(jnp.tanh(pooled @ w1 + b1), 0.0)          # (B, 4)
    out = h @ w2 + b2                                         # (B, C)
    return out.mean(axis=0)                                   # (C,)


if __name__ == "__main__":
    key = jax.random.PRNGKey(0)
    B, C, H, W = 2, 4, 16, 16  # cha = C = 4

    kx, k1, k2, k3, k4 = jax.random.split(key, 5)
    x = jax.random.normal(kx, (B, C, H, W), dtype=jnp.float32)

    # PyTorch Linear(cha, 4): weight (4, cha), bias (4,). Weights stored
    # pre-transposed so the kernel computes x @ W + b directly.
    w1 = 0.1 * jax.random.normal(k1, (C, 4), dtype=jnp.float32)   # Linear(cha,4).weight.T
    b1 = 0.1 * jax.random.normal(k2, (4,), dtype=jnp.float32)     # Linear(cha,4).bias
    w2 = 0.1 * jax.random.normal(k3, (4, C), dtype=jnp.float32)   # Linear(4,cha).weight.T
    b2 = 0.1 * jax.random.normal(k4, (C,), dtype=jnp.float32)     # Linear(4,cha).bias

    out = jax.block_until_ready(my_channel_attention(x, w1, b1, w2, b2))

    ref = reference_channel_attention(x, w1, b1, w2, b2)
    assert out.shape == (C,), out.shape
    assert jnp.allclose(out, ref, atol=1e-5, rtol=1e-5), (out, ref)

    print("KERNEL_OK")
</pallas_src>

<mosaic_0001>
module attributes {stable_mosaic.version = 11 : i64} {
  func.func @_pool_sum_kernel(%arg0: i32, %arg1: i32, %arg2: memref<8x256xf32, #tpu.memory_space<vmem>>, %arg3: memref<8x1xf32, #tpu.memory_space<vmem>>, %arg4: memref<8x128xf32, #tpu.memory_space<vmem>>) attributes {dimension_semantics = [#tpu.dimension_semantics<parallel>, #tpu.dimension_semantics<arbitrary>], iteration_bounds = array<i64: 1, 1>, scalar_prefetch = 0 : i64, scratch_operands = 1 : i64, tpu.core_type = #tpu.core_type<tc>, window_params = [{transform_indices = @transform_0, window_bounds = array<i64: 8, 256>}, {transform_indices = @transform_1, window_bounds = array<i64: 8, 1>}]} {
    %c0_i32 = arith.constant 0 : i32
    %0 = arith.cmpi eq, %arg1, %c0_i32 : i32
    %1 = arith.extui %0 : i1 to i32
    %c0_i32_0 = arith.constant 0 : i32
    %2 = arith.cmpi ne, %1, %c0_i32_0 : i32
    scf.if %2 {
      %cst = arith.constant 0.000000e+00 : f32
      %13 = vector.broadcast %cst : f32 to vector<8x128xf32>
      %c0_8 = arith.constant 0 : index
      %c0_9 = arith.constant 0 : index
      %14 = vector.load %arg4[%c0_8, %c0_9] : memref<8x128xf32, #tpu.memory_space<vmem>>, vector<8x128xf32>
      tpu.vector_store %arg4[%c0_8, %c0_9], %13 {strides = array<i32>} : memref<8x128xf32, #tpu.memory_space<vmem>>, vector<8x128xf32>,
    } else {
    }
    %c0 = arith.constant 0 : index
    %c0_1 = arith.constant 0 : index
    %3 = vector.load %arg2[%c0, %c0_1] : memref<8x256xf32, #tpu.memory_space<vmem>>, vector<8x256xf32>
    %4 = vector.extract_strided_slice %3 {offsets = [0, 0], sizes = [8, 128], strides = [1, 1]} : vector<8x256xf32> to vector<8x128xf32>
    %5 = vector.extract_strided_slice %3 {offsets = [0, 128], sizes = [8, 128], strides = [1, 1]} : vector<8x256xf32> to vector<8x128xf32>
    %6 = arith.addf %4, %5 : vector<8x128xf32>
    %c0_2 = arith.constant 0 : index
    %c0_3 = arith.constant 0 : index
    %7 = vector.load %arg4[%c0_2, %c0_3] : memref<8x128xf32, #tpu.memory_space<vmem>>, vector<8x128xf32>
    %8 = arith.addf %7, %6 : vector<8x128xf32>
    %c0_4 = arith.constant 0 : index
    %c0_5 = arith.constant 0 : index
    %9 = vector.load %arg4[%c0_4, %c0_5] : memref<8x128xf32, #tpu.memory_space<vmem>>, vector<8x128xf32>
    tpu.vector_store %arg4[%c0_4, %c0_5], %8 {strides = array<i32>} : memref<8x128xf32, #tpu.memory_space<vmem>>, vector<8x128xf32>,
    %c0_i32_6 = arith.constant 0 : i32
    %10 = arith.cmpi eq, %arg1, %c0_i32_6 : i32
    %11 = arith.extui %10 : i1 to i32
    %c0_i32_7 = arith.constant 0 : i32
    %12 = arith.cmpi ne, %11, %c0_i32_7 : i32
    scf.if %12 {
      %c0_8 = arith.constant 0 : index
      %c0_9 = arith.constant 0 : index
      %13 = vector.load %arg4[%c0_8, %c0_9] : memref<8x128xf32, #tpu.memory_space<vmem>>, vector<8x128xf32>
      %cst = arith.constant dense<0.000000e+00> : vector<8xf32>
      %14 = vector.multi_reduction <add>, %13, %cst [1] : vector<8x128xf32> to vector<8xf32>
      %15 = vector.shape_cast %14 : vector<8xf32> to vector<8x1xf32>
      %cst_10 = arith.constant 3.906250e-03 : f32
      %16 = vector.broadcast %cst_10 : f32 to vector<8x1xf32>
      %17 = arith.mulf %15, %16 : vector<8x1xf32>
      %c0_11 = arith.constant 0 : index
      %c0_12 = arith.constant 0 : index
      %18 = vector.load %arg3[%c0_11, %c0_12] : memref<8x1xf32, #tpu.memory_space<vmem>>, vector<8x1xf32>
      tpu.vector_store %arg3[%c0_11, %c0_12], %17 {strides = array<i32>} : memref<8x1xf32, #tpu.memory_space<vmem>>, vector<8x1xf32>,
    } else {
    }
    return
  }
  func.func @transform_0(%arg0: i32, %arg1: i32) -> (i32, i32) {
    %c0_i32 = arith.constant 0 : i32
    return %arg0, %arg1 : i32, i32
  }
  func.func @transform_1(%arg0: i32, %arg1: i32) -> (i32, i32) {
    %c0_i32 = arith.constant 0 : i32
    %c0_i32_0 = arith.constant 0 : i32
    return %arg0, %c0_i32 : i32, i32
  }
}

</mosaic_0001>

<llo_original>
// kernel: squeeze.1
$region0: #{squeeze.1}
  %s0 = inlined_call_operand.vmem [shape: bf16[8], index: 0, kind: input, shape index: {}]
  %s1 = inlined_call_operand.vmem [shape: bf16[2,4], index: 1, kind: output, shape index: {}]
  $region1: #{squeeze.1} parent=0
    #allocation0 [shape = 'u8[4096]{0}', space=vmem, size = 0x1000, scoped, tag = 'scoped mem for output reshape']
    #allocation1 [shape = 'u8[4096]{0}', space=vmem, size = 0x1000, scoped, tag = 'scoped mem for input reshape']
    %s3 = smul.u32 1, 2
    %s4 = sshllo.u32 0, %s3
    %s5 = sshrl.u32 %s4, 1
    %s6 = sor.u32 %s4, %s5
    %s7 = sand.u32 %s6, 85
    %s8 = sshrl.u32 %s7, 1
    %s9 = sor.u32 %s7, %s8
    %s10 = sand.u32 51, %s9
    %s11 = sshrl.u32 %s10, 2
    %s12 = sor.u32 %s10, %s11
    %s13 = sand.u32 15, %s12
    %v14 = vld [vmem:[%s0] sm:%s13]
    %v15 = vunpack.c.l.bf16 %v14
    %v16 = vunpack.c.h.bf16 %v14
    %17 = vst [vmem:[#allocation1] sm:%s4] %v15
    %v18 = vld [vmem:[#allocation1] sm:$0x1]
    %vm19 = vcmask 31744
    %20 = vst.msk [vmem:[#allocation0] sm:$0x1] %vm19, %v18
    %v21 = vld [vmem:[#allocation1] sm:$0x1]
    %22 = vrot.lane.b32.xlu0 %v21, 124
    %v23 = vpop.permute.xlu0 %22
    %vm24 = vcmask 31744
    %s25 = scalar_lea.vmem [#allocation0], 1
    %26 = vst.msk [vmem:[%s25] sm:$0x1] %vm24, %v23
    %s28 = smul.u32 1, 2
    %s29 = sshllo.u32 0, %s28
    %s30 = sshrl.u32 %s28, 1
    %v31 = vld [vmem:[#allocation0] sm:%s29]
    %v32 = vpack.c.bf16 0.0, %v31
    %s33 = sshllo.u32 0, %s30
    %34 = vst [vmem:[%s1] sm:%s33] %v32

// kernel: _my_channel_attention.1
$region0: #{_my_channel_attention.1}
  #allocation0 [shape = 'u32[]', space=smem, size = 0x4, offset = 0x4, fixed_abs, tag = 'smem constant byte address 0x4 - core index']
  #allocation1 [shape = 'u32[144,128]{1,0:T(1,128)}', space=vmem, size = 0x12000, scoped, tag = 'internal scratch']
  #allocation2 [shape = 'f32[8,128]{1,0:T(8,128)}', space=vmem, size = 0x1000, scoped, tag = 'scratch operand']
  %s0 = inlined_call_operand.vmem [shape: f32[8,256], index: 0, kind: input, shape index: {}]
  %s1 = inlined_call_operand.vmem [shape: f32[8,1], index: 1, kind: output, shape index: {}]
  %s2 = sld [smem:[#allocation0]]
  $region22: #{_my_channel_attention.1} parent=0
    _
  %s4 = ssub.s32 1, %s2
  %s5 = scalar_select 0, %s4, %s2
  // Predicated region
  $region2: #{_my_channel_attention.1} parent=0 // pred_check
    _
  $region3: #{_my_channel_attention.1} parent=0 // pred_check_branch
    %7 = sbr.rel (0) target = $region5
  $region4: #{_my_channel_attention.1} parent=0 // pred_region
    _
  $region5: #{_my_channel_attention.1} parent=0 // pred_fallthru
    _
  %p8 = scmp.eq.s32.totalorder 0, 0
  // Predicated region
  $region6: #{_my_channel_attention.1} parent=0 // pred_check
    %p9 = pneg %p8
  $region7: #{_my_channel_attention.1} parent=0 // pred_check_branch
    %11 = sbr.rel (%p9) target = $region9
  $region8: #{_my_channel_attention.1} parent=0 // pred_region
    %12 = vst [vmem:[#allocation2] sm:$0xff] 0.0
  $region9: #{_my_channel_attention.1} parent=0 // pred_fallthru
    _
  %v13 = vld [vmem:[%s0] sm:$0xff]
  %v14 = vld [vmem:[%s0 + $0x8] sm:$0xff]
  %v15 = vadd.f32 %v13, %v14
  %v16 = vld [vmem:[#allocation2] sm:$0xff]
  %v17 = vadd.f32 %v16, %v15
  %18 = vst [vmem:[#allocation2] sm:$0xff] %v17
  // Predicated region
  $region10: #{_my_channel_attention.1} parent=0 // pred_check
    %p19 = pneg %p8
  $region11: #{_my_channel_attention.1} parent=0 // pred_check_branch
    %21 = sbr.rel (%p19) target = $region13
  $region12: #{_my_channel_attention.1} parent=0 // pred_region
    %v22 = vld [vmem:[#allocation2] sm:$0xff]
    %23 = vadd.xlane.f32.xlu0 %v22
    %v24 = vpop.xlane.xlu0 %23
    %v25 = vmul.f32 %v24, 0.00390625
    %vm26 = vcmask 7168
    %27 = vst.msk [vmem:[%s1] sm:$0xff] %vm26, %v25
  $region13: #{_my_channel_attention.1} parent=0 // pred_fallthru
    _
  // Predicated region
  $region14: #{_my_channel_attention.1} parent=0 // pred_check
    _
  $region15: #{_my_channel_attention.1} parent=0 // pred_check_branch
    %29 = sbr.rel (0) target = $region17
  $region16: #{_my_channel_attention.1} parent=0 // pred_region
    _
  $region17: #{_my_channel_attention.1} parent=0 // pred_fallthru
    _
  // Predicated region
  $region18: #{_my_channel_attention.1} parent=0 // pred_check
    _
  $region19: #{_my_channel_attention.1} parent=0 // pred_check_branch
    %31 = sbr.rel (0) target = $region21
  $region20: #{_my_channel_attention.1} parent=0 // pred_region
    _
  $region21: #{_my_channel_attention.1} parent=0 // pred_fallthru
    _

</llo_original>
